<compile_context>
chip_gen: v7x
topology: tpu7x:2x2x1
jax: 0.10.0
libtpu: 0.0.40
codegen_flags: <defaults>
</compile_context>

<pallas_src>
import math

import jax
import jax.numpy as jnp
from jax.experimental import pallas as pl
from jax.experimental.pallas import tpu as pltpu


def _round_up(x, m):
    return (x + m - 1) // m * m


def _vmem_ceiling_bytes():
    """Generation-aware ceiling for vmem_limit_bytes (keep ~25% headroom)."""
    cap = 64 << 20  # conservative default: v7x has 64 MiB per TensorCore
    try:
        cap = int(pltpu.get_tpu_info().vmem_capacity_bytes)
    except Exception:
        pass
    return (cap * 3) // 4


def lora_linear_kernel(x_ref, wt_ref, b_ref, xa_ref, bb_ref, o_ref, acc_ref):
    """One (tm, tn) output tile, accumulated over the K grid axis.

    x_ref  : (tm, tk)     activation tile (native dtype straight to the MXU)
    wt_ref : (tk, tn)     W^T tile (base weight, pre-transposed & padded)
    b_ref  : (1, tn)      bias tile
    xa_ref : (tm, rpad)   scaling * (x @ A), precomputed in the wrapper
    bb_ref : (rpad, tn)   LoRA B tile (rank zero-padded to 128 lanes)
    o_ref  : (tm, tn)     output tile (lane-dense store)
    acc_ref: (tm, tn)     f32 accumulator scratch for x @ W^T
    """
    k = pl.program_id(2)
    prod = jnp.dot(x_ref[...], wt_ref[...], preferred_element_type=jnp.float32)

    @pl.when(k == 0)
    def _init():
        acc_ref[...] = prod            # init-with-first-product, no zero fill

    @pl.when(k != 0)
    def _accum():
        acc_ref[...] += prod

    @pl.when(k == pl.num_programs(2) - 1)
    def _finalize():
        lora = jnp.dot(xa_ref[...], bb_ref[...],
                       preferred_element_type=jnp.float32)
        out = acc_ref[...] + b_ref[...].astype(jnp.float32) + lora
        # TODO(synk): nn.Dropout on the LoRA path is identity in eval mode;
        # training-time dropout masking (pltpu.prng_random_bits) not implemented.
        o_ref[...] = out.astype(o_ref.dtype)


def prepare_lora_linear(weight, bias, lora_A, lora_B, *, alpha=32.0, rank=4,
                        tile_n=1024, tile_k=1024):
    """One-time per-weight-set transpose + padding (hoisted off the call path).

    weight : [out_features, in_features]  (PyTorch nn.Linear convention)
    bias   : [out_features]
    lora_A : [in_features, rank]
    lora_B : [rank, out_features]
    """
    out_features, in_features = weight.shape
    assert lora_A.shape == (in_features, rank)
    assert lora_B.shape == (rank, out_features)
    scaling = alpha / rank

    r_pad = _round_up(max(rank, 1), 128)               # lane-dense LoRA tiles
    tk = min(tile_k, _round_up(in_features, 128))
    tn = min(tile_n, _round_up(out_features, 128))
    k_pad = _round_up(in_features, tk)
    n_pad = _round_up(out_features, tn)

    wt_p = jnp.pad(weight.T,
                   ((0, k_pad - in_features), (0, n_pad - out_features)))
    b_p = jnp.pad(bias, (0, n_pad - out_features)).reshape(1, n_pad)
    a_p = jnp.pad(lora_A, ((0, k_pad - in_features), (0, r_pad - rank)))
    bb_p = jnp.pad(lora_B, ((0, r_pad - rank), (0, n_pad - out_features)))

    return dict(wt_p=wt_p, b_p=b_p, a_p=a_p, bb_p=bb_p, scaling=scaling,
                in_features=in_features, out_features=out_features,
                tn=tn, tk=tk, k_pad=k_pad, n_pad=n_pad, r_pad=r_pad)


def lora_linear_apply(params, x, *, tile_m=1024):
    """Eval-mode LoRALinear forward: x @ W^T + bias + scaling*(x @ A) @ B."""
    in_features = params["in_features"]
    out_features = params["out_features"]
    tn, tk = params["tn"], params["tk"]
    k_pad, n_pad, r_pad = params["k_pad"], params["n_pad"], params["r_pad"]

    batch_shape = x.shape[:-1]
    x_flat = x.reshape(-1, in_features)
    m = x_flat.shape[0]

    itemsize = jnp.dtype(x.dtype).itemsize
    m_align = max(8, 32 // itemsize)        # f32: 8, bf16: 16, int8/fp8: 32
    tm = min(tile_m, _round_up(m, m_align))
    m_pad = _round_up(m, tm)

    # Per-call padding of activations only (weights are pre-padded).
    x_p = jnp.pad(x_flat, ((0, m_pad - m), (0, k_pad - in_features)))

    # Skinny LoRA-A matmul done with plain XLA in the wrapper (review opt 1b):
    # xa = scaling * (x @ A), already 128-lane padded.  Exact for zero padding.
    xa_p = (jnp.dot(x_p, params["a_p"], preferred_element_type=jnp.float32)
            * params["scaling"]).astype(x.dtype)

    grid = (m_pad // tm, n_pad // tn, k_pad // tk)

    # --- VMEM accounting on physically padded tiles --------------------------
    vmem_need = (
        2 * (tm * tk                              # x tile (double-buffered)
             + tk * tn                            # W^T tile
             + m_align * tn                       # bias (sublane-padded)
             + tm * r_pad                         # xa tile
             + r_pad * tn) * itemsize             # lora_B tile
        + 2 * tm * tn * itemsize                  # output (double-buffered)
        + tm * tn * 4)                            # f32 accumulator scratch
    ceiling = _vmem_ceiling_bytes()
    vmem_limit = int(min(max(vmem_need * 5 // 4, 32 << 20), ceiling))
    vmem_limit = max(vmem_limit, vmem_need)       # never request < needed

    flops = 2 * m_pad * n_pad * k_pad + 2 * m_pad * r_pad * n_pad
    bytes_accessed = ((x_p.size + params["wt_p"].size + params["b_p"].size
                       + xa_p.size + params["bb_p"].size) * itemsize
                      + m_pad * n_pad * itemsize)

    out_flat = pl.pallas_call(
        lora_linear_kernel,
        out_shape=jax.ShapeDtypeStruct((m_pad, n_pad), x.dtype),
        grid_spec=pltpu.PrefetchScalarGridSpec(
            num_scalar_prefetch=0,
            grid=grid,
            in_specs=[
                pl.BlockSpec((tm, tk), lambda i, j, k: (i, k)),      # x
                pl.BlockSpec((tk, tn), lambda i, j, k: (k, j)),      # W^T
                pl.BlockSpec((1, tn), lambda i, j, k: (0, j)),       # bias
                pl.BlockSpec((tm, r_pad), lambda i, j, k: (i, 0)),   # xa
                pl.BlockSpec((r_pad, tn), lambda i, j, k: (0, j)),   # lora_B
            ],
            out_specs=pl.BlockSpec((tm, tn), lambda i, j, k: (i, j)),
            scratch_shapes=[pltpu.VMEM((tm, tn), jnp.float32)],
        ),
        compiler_params=pltpu.CompilerParams(
            dimension_semantics=("parallel", "parallel", "arbitrary"),
            vmem_limit_bytes=vmem_limit),
        cost_estimate=pl.CostEstimate(
            flops=flops, transcendentals=0, bytes_accessed=bytes_accessed),
    )(x_p, params["wt_p"], params["b_p"], xa_p, params["bb_p"])

    return out_flat[:m, :out_features].reshape(*batch_shape, out_features)


def lora_linear(x, weight, bias, lora_A, lora_B, *, alpha=32.0, rank=4,
                tile_m=1024, tile_n=1024, tile_k=1024):
    """Convenience wrapper: prepare (should be cached in production) + apply."""
    params = prepare_lora_linear(weight, bias, lora_A, lora_B,
                                 alpha=alpha, rank=rank,
                                 tile_n=tile_n, tile_k=tile_k)
    return lora_linear_apply(params, x, tile_m=tile_m)


def _reference(x, weight, bias, lora_A, lora_B, *, alpha=32.0, rank=4):
    scaling = alpha / rank
    base = jnp.einsum("bsi,oi->bso", x, weight) + bias
    lora = jnp.einsum("bsi,ir,ro->bso", x, lora_A, lora_B) * scaling
    return base + lora


if __name__ == "__main__":
    batch, seq = 2, 8
    in_features, out_features, rank, alpha = 32, 32, 4, 32.0

    key = jax.random.PRNGKey(0)
    kx, kw, kb, ka, kbb = jax.random.split(key, 5)

    # Deterministic synthetic parameters (shapes from the module __init__):
    #   nn.Linear: W ~ U(-1/sqrt(in), 1/sqrt(in)), bias likewise.
    bound = 1.0 / math.sqrt(in_features)
    weight = jax.random.uniform(kw, (out_features, in_features), jnp.float32,
                                -bound, bound)
    bias = jax.random.uniform(kb, (out_features,), jnp.float32, -bound, bound)

    #   LoRA A: kaiming_uniform_(a=sqrt(5)) -> U(-1/sqrt(in), 1/sqrt(in)).
    lora_A = jax.random.uniform(ka, (in_features, rank), jnp.float32,
                                -bound, bound)
    #   LoRA B is zeros in __init__; use small random values here so the LoRA
    #   matmul path is actually exercised (synthetic init, not a checkpoint).
    lora_B = 0.01 * jax.random.normal(kbb, (rank, out_features), jnp.float32)

    x = jax.random.normal(kx, (batch, seq, in_features), jnp.float32)

    # Production usage: call prepare_* once, reuse params across calls.
    params = prepare_lora_linear(weight, bias, lora_A, lora_B,
                                 alpha=alpha, rank=rank)
    out = lora_linear_apply(params, x)
    out = jax.block_until_ready(out)

    ref = _reference(x, weight, bias, lora_A, lora_B, alpha=alpha, rank=rank)
    assert out.shape == (batch, seq, out_features)
    assert jnp.allclose(out, ref, atol=1e-4, rtol=1e-4), "mismatch vs reference"

    print("KERNEL_OK")
</pallas_src>

<mosaic_0001>
module attributes {stable_mosaic.version = 11 : i64} {
  func.func @lora_linear_kernel(%arg0: i32, %arg1: i32, %arg2: i32, %arg3: memref<16x128xf32, #tpu.memory_space<vmem>>, %arg4: memref<128x128xf32, #tpu.memory_space<vmem>>, %arg5: memref<1x128xf32, #tpu.memory_space<vmem>>, %arg6: memref<16x128xf32, #tpu.memory_space<vmem>>, %arg7: memref<128x128xf32, #tpu.memory_space<vmem>>, %arg8: memref<16x128xf32, #tpu.memory_space<vmem>>, %arg9: memref<16x128xf32, #tpu.memory_space<vmem>>) attributes {dimension_semantics = [#tpu.dimension_semantics<parallel>, #tpu.dimension_semantics<parallel>, #tpu.dimension_semantics<arbitrary>], iteration_bounds = array<i64: 1, 1, 1>, scalar_prefetch = 0 : i64, scratch_operands = 1 : i64, tpu.core_type = #tpu.core_type<tc>, window_params = [{transform_indices = @transform_0, window_bounds = array<i64: 16, 128>}, {transform_indices = @transform_1, window_bounds = array<i64: 128, 128>}, {transform_indices = @transform_2, window_bounds = array<i64: 1, 128>}, {transform_indices = @transform_3, window_bounds = array<i64: 16, 128>}, {transform_indices = @transform_4, window_bounds = array<i64: 128, 128>}, {transform_indices = @transform_5, window_bounds = array<i64: 16, 128>}]} {
    %c0 = arith.constant 0 : index
    %c0_0 = arith.constant 0 : index
    %0 = vector.load %arg3[%c0, %c0_0] : memref<16x128xf32, #tpu.memory_space<vmem>>, vector<16x128xf32>
    %c0_1 = arith.constant 0 : index
    %c0_2 = arith.constant 0 : index
    %1 = vector.load %arg4[%c0_1, %c0_2] : memref<128x128xf32, #tpu.memory_space<vmem>>, vector<128x128xf32>
    %cst = arith.constant dense<0.000000e+00> : vector<16x128xf32>
    %2 = tpu.matmul %0, %1, %cst {dimension_numbers = #tpu.dot_dimension_numbers<[1], [0], [0], [1], [0, 0, 1, 1], [], []>} : vector<16x128xf32>, vector<128x128xf32>, vector<16x128xf32> -> vector<16x128xf32>
    %c0_i32 = arith.constant 0 : i32
    %3 = arith.cmpi eq, %arg2, %c0_i32 : i32
    %4 = arith.extui %3 : i1 to i32
    %c0_i32_3 = arith.constant 0 : i32
    %5 = arith.cmpi ne, %4, %c0_i32_3 : i32
    scf.if %5 {
      %c0_8 = arith.constant 0 : index
      %c0_9 = arith.constant 0 : index
      %12 = vector.load %arg9[%c0_8, %c0_9] : memref<16x128xf32, #tpu.memory_space<vmem>>, vector<16x128xf32>
      tpu.vector_store %arg9[%c0_8, %c0_9], %2 {strides = array<i32>} : memref<16x128xf32, #tpu.memory_space<vmem>>, vector<16x128xf32>,
    } else {
    }
    %c0_i32_4 = arith.constant 0 : i32
    %6 = arith.cmpi ne, %arg2, %c0_i32_4 : i32
    %7 = arith.extui %6 : i1 to i32
    %c0_i32_5 = arith.constant 0 : i32
    %8 = arith.cmpi ne, %7, %c0_i32_5 : i32
    scf.if %8 {
      %c0_8 = arith.constant 0 : index
      %c0_9 = arith.constant 0 : index
      %12 = vector.load %arg9[%c0_8, %c0_9] : memref<16x128xf32, #tpu.memory_space<vmem>>, vector<16x128xf32>
      %13 = arith.addf %12, %2 : vector<16x128xf32>
      %c0_10 = arith.constant 0 : index
      %c0_11 = arith.constant 0 : index
      %14 = vector.load %arg9[%c0_10, %c0_11] : memref<16x128xf32, #tpu.memory_space<vmem>>, vector<16x128xf32>
      tpu.vector_store %arg9[%c0_10, %c0_11], %13 {strides = array<i32>} : memref<16x128xf32, #tpu.memory_space<vmem>>, vector<16x128xf32>,
    } else {
    }
    %c0_i32_6 = arith.constant 0 : i32
    %9 = arith.cmpi eq, %arg2, %c0_i32_6 : i32
    %10 = arith.extui %9 : i1 to i32
    %c0_i32_7 = arith.constant 0 : i32
    %11 = arith.cmpi ne, %10, %c0_i32_7 : i32
    scf.if %11 {
      %c0_8 = arith.constant 0 : index
      %c0_9 = arith.constant 0 : index
      %12 = vector.load %arg6[%c0_8, %c0_9] : memref<16x128xf32, #tpu.memory_space<vmem>>, vector<16x128xf32>
      %c0_10 = arith.constant 0 : index
      %c0_11 = arith.constant 0 : index
      %13 = vector.load %arg7[%c0_10, %c0_11] : memref<128x128xf32, #tpu.memory_space<vmem>>, vector<128x128xf32>
      %cst_12 = arith.constant dense<0.000000e+00> : vector<16x128xf32>
      %14 = tpu.matmul %12, %13, %cst_12 {dimension_numbers = #tpu.dot_dimension_numbers<[1], [0], [0], [1], [0, 0, 1, 1], [], []>} : vector<16x128xf32>, vector<128x128xf32>, vector<16x128xf32> -> vector<16x128xf32>
      %c0_13 = arith.constant 0 : index
      %c0_14 = arith.constant 0 : index
      %15 = vector.load %arg9[%c0_13, %c0_14] : memref<16x128xf32, #tpu.memory_space<vmem>>, vector<16x128xf32>
      %c0_15 = arith.constant 0 : index
      %c0_16 = arith.constant 0 : index
      %16 = vector.load %arg5[%c0_15, %c0_16] : memref<1x128xf32, #tpu.memory_space<vmem>>, vector<1x128xf32>
      %17 = vector.broadcast %16 : vector<1x128xf32> to vector<16x128xf32>
      %18 = arith.addf %15, %17 : vector<16x128xf32>
      %19 = arith.addf %18, %14 : vector<16x128xf32>
      %c0_17 = arith.constant 0 : index
      %c0_18 = arith.constant 0 : index
      %20 = vector.load %arg8[%c0_17, %c0_18] : memref<16x128xf32, #tpu.memory_space<vmem>>, vector<16x128xf32>
      tpu.vector_store %arg8[%c0_17, %c0_18], %19 {strides = array<i32>} : memref<16x128xf32, #tpu.memory_space<vmem>>, vector<16x128xf32>,
    } else {
    }
    return
  }
  func.func @transform_0(%arg0: i32, %arg1: i32, %arg2: i32) -> (i32, i32) {
    %c0_i32 = arith.constant 0 : i32
    return %arg0, %arg2 : i32, i32
  }
  func.func @transform_1(%arg0: i32, %arg1: i32, %arg2: i32) -> (i32, i32) {
    %c0_i32 = arith.constant 0 : i32
    return %arg2, %arg1 : i32, i32
  }
  func.func @transform_2(%arg0: i32, %arg1: i32, %arg2: i32) -> (i32, i32) {
    %c0_i32 = arith.constant 0 : i32
    %c0_i32_0 = arith.constant 0 : i32
    return %c0_i32, %arg1 : i32, i32
  }
  func.func @transform_3(%arg0: i32, %arg1: i32, %arg2: i32) -> (i32, i32) {
    %c0_i32 = arith.constant 0 : i32
    %c0_i32_0 = arith.constant 0 : i32
    return %arg0, %c0_i32 : i32, i32
  }
  func.func @transform_4(%arg0: i32, %arg1: i32, %arg2: i32) -> (i32, i32) {
    %c0_i32 = arith.constant 0 : i32
    %c0_i32_0 = arith.constant 0 : i32
    return %c0_i32, %arg1 : i32, i32
  }
  func.func @transform_5(%arg0: i32, %arg1: i32, %arg2: i32) -> (i32, i32) {
    %c0_i32 = arith.constant 0 : i32
    return %arg0, %arg1 : i32, i32
  }
}

</mosaic_0001>

<llo_original>
// kernel: tpu_custom_call.1
$region0: #{tpu_custom_call.1}
  #allocation0 [shape = 'u32[]', space=smem, size = 0x4, offset = 0x4, fixed_abs, tag = 'smem constant byte address 0x4 - core index']
  #allocation1 [shape = 'u32[144,128]{1,0:T(1,128)}', space=vmem, size = 0x12000, scoped, tag = 'internal scratch']
  #allocation2 [shape = 'f32[16,128]{1,0:T(8,128)}', space=vmem, size = 0x2000, scoped, tag = 'scratch operand']
  %s0 = inlined_call_operand.hbm [shape: f32[16,128], index: 0, kind: input, shape index: {}]
  %s1 = inlined_call_operand.hbm [shape: f32[128,128], index: 1, kind: input, shape index: {}]
  %s2 = inlined_call_operand.vmem [shape: f32[1,128], index: 2, kind: input, shape index: {}]
  %s3 = inlined_call_operand.hbm [shape: f32[16,128], index: 3, kind: input, shape index: {}]
  %s4 = inlined_call_operand.hbm [shape: f32[128,128], index: 4, kind: input, shape index: {}]
  %s5 = inlined_call_operand.hbm [shape: f32[16,128], index: 5, kind: output, shape index: {}]
  %s6 = sld [smem:[#allocation0]]
  $region58: #{tpu_custom_call.1} parent=0
    _
  %s8 = ssub.s32 1, %s6
  %s9 = scalar_select 0, %s8, %s6
  $region1: #{tpu_custom_call.1} parent=0
    #allocation3 [shape = 'u8[8192]{0}', space=vmem, size = 0x2000, scoped, tag = 'input window, operand 0, single buffered']
    #allocation4 [shape = 's32[1]{0}', space=sflag, size = 0x4, scoped, tag = 'scoped memory for tpu_custom_call.1']
    #allocation5 [shape = 's32[1]{0}', space=sflag, size = 0x4, scoped, tag = 'scoped memory for tpu_custom_call.1']
    #allocation6 [shape = 'u8[65536]{0}', space=vmem, size = 0x10000, scoped, tag = 'input window, operand 1, single buffered']
    #allocation7 [shape = 's32[1]{0}', space=sflag, size = 0x4, scoped, tag = 'scoped memory for tpu_custom_call.1']
    #allocation8 [shape = 'u8[8192]{0}', space=vmem, size = 0x2000, scoped, tag = 'input window, operand 3, single buffered']
    #allocation9 [shape = 'u8[65536]{0}', space=vmem, size = 0x10000, scoped, tag = 'input window, operand 4, single buffered']
    #allocation10 [shape = 's32[1]{0}', space=sflag, size = 0x4, scoped, tag = 'scoped memory for tpu_custom_call.1']
    #allocation11 [shape = 'u8[8192]{0}', space=vmem, size = 0x2000, scoped, tag = 'output window, operand 0, single buffered']
    %10 = vsyncpa [#allocation4], 0
    %11 = vsyncpa [#allocation7], 0
    %12 = vsyncpa [#allocation10], 0
    %13 = vsyncpa [#allocation5], 0
    // Predicated region
    $region2: #{tpu_custom_call.1} parent=1 // pred_check
      _
    $region3: #{tpu_custom_call.1} parent=1 // pred_check_branch
      %15 = sbr.rel (0) target = $region5
    $region4: #{tpu_custom_call.1} parent=1 // pred_region
      %s17 = ssub.s32 256, 256
      %18 = vsyncadd [#allocation4], %s17
      %s19 = sshll.u32 [#allocation3], 4
      %s20 = int_to_ptr.vmem [resolvable:$true] %s19
      %25 = dma.hbm_to_vmem [thread:$0]  %s0, 256, %s20, [#allocation4], 128, 128, 8
    $region5: #{tpu_custom_call.1} parent=1 // pred_fallthru
      _
    // Predicated region
    $region6: #{tpu_custom_call.1} parent=1 // pred_check
      _
    $region7: #{tpu_custom_call.1} parent=1 // pred_check_branch
      %27 = sbr.rel (0) target = $region9
    $region8: #{tpu_custom_call.1} parent=1 // pred_region
      %s29 = ssub.s32 2048, 2048
      %30 = vsyncadd [#allocation7], %s29
      %s31 = sshll.u32 [#allocation6], 4
      %s32 = int_to_ptr.vmem [resolvable:$true] %s31
      %37 = dma.hbm_to_vmem [thread:$0]  %s1, 2048, %s32, [#allocation7], 128, 128, 8
    $region9: #{tpu_custom_call.1} parent=1 // pred_fallthru
      _
    // Predicated region
    $region10: #{tpu_custom_call.1} parent=1 // pred_check
      _
    $region11: #{tpu_custom_call.1} parent=1 // pred_check_branch
      %39 = sbr.rel (0) target = $region13
    $region12: #{tpu_custom_call.1} parent=1 // pred_region
      _
    $region13: #{tpu_custom_call.1} parent=1 // pred_fallthru
      _
    // Predicated region
    $region14: #{tpu_custom_call.1} parent=1 // pred_check
      _
    $region15: #{tpu_custom_call.1} parent=1 // pred_check_branch
      %41 = sbr.rel (0) target = $region17
    $region16: #{tpu_custom_call.1} parent=1 // pred_region
      %s43 = ssub.s32 256, 256
      %44 = vsyncadd [#allocation7], %s43
      %s45 = sshll.u32 [#allocation8], 4
      %s46 = int_to_ptr.vmem [resolvable:$true] %s45
      %51 = dma.hbm_to_vmem [thread:$0]  %s3, 256, %s46, [#allocation7], 128, 128, 8
    $region17: #{tpu_custom_call.1} parent=1 // pred_fallthru
      _
    // Predicated region
    $region18: #{tpu_custom_call.1} parent=1 // pred_check
      _
    $region19: #{tpu_custom_call.1} parent=1 // pred_check_branch
      %53 = sbr.rel (0) target = $region21
    $region20: #{tpu_custom_call.1} parent=1 // pred_region
      %s55 = ssub.s32 2048, 2048
      %56 = vsyncadd [#allocation10], %s55
      %s57 = sshll.u32 [#allocation9], 4
      %s58 = int_to_ptr.vmem [resolvable:$true] %s57
      %63 = dma.hbm_to_vmem [thread:$0]  %s4, 2048, %s58, [#allocation10], 128, 128, 8
    $region21: #{tpu_custom_call.1} parent=1 // pred_fallthru
      _
    // Predicated region
    $region22: #{tpu_custom_call.1} parent=1 // pred_check
      _
    $region23: #{tpu_custom_call.1} parent=1 // pred_check_branch
      %65 = sbr.rel (0) target = $region25
    $region24: #{tpu_custom_call.1} parent=1 // pred_region
      %66 = dma.done [#allocation4], 256
    $region25: #{tpu_custom_call.1} parent=1 // pred_fallthru
      _
    // Predicated region
    $region26: #{tpu_custom_call.1} parent=1 // pred_check
      _
    $region27: #{tpu_custom_call.1} parent=1 // pred_check_branch
      %68 = sbr.rel (0) target = $region29
    $region28: #{tpu_custom_call.1} parent=1 // pred_region
      %69 = dma.done [#allocation7], 2048
    $region29: #{tpu_custom_call.1} parent=1 // pred_fallthru
      _
    // Predicated region
    $region30: #{tpu_custom_call.1} parent=1 // pred_check
      _
    $region31: #{tpu_custom_call.1} parent=1 // pred_check_branch
      %71 = sbr.rel (0) target = $region33
    $region32: #{tpu_custom_call.1} parent=1 // pred_region
      %72 = dma.done [#allocation7], 256
    $region33: #{tpu_custom_call.1} parent=1 // pred_fallthru
      _
    // Predicated region
    $region34: #{tpu_custom_call.1} parent=1 // pred_check
      _
    $region35: #{tpu_custom_call.1} parent=1 // pred_check_branch
      %74 = sbr.rel (0) target = $region37
    $region36: #{tpu_custom_call.1} parent=1 // pred_region
      %75 = dma.done [#allocation10], 2048
    $region37: #{tpu_custom_call.1} parent=1 // pred_fallthru
      _
    %v76 = vld [vmem:[#allocation3] sm:$0xff]
    %v77 = vld [vmem:[#allocation3 + $0x8] sm:$0xff]
    %v78 = vld [vmem:[#allocation6] sm:$0xff]
    %v79 = vld [vmem:[#allocation6 + $0x8] sm:$0xff]
    %v80 = vld [vmem:[#allocation6 + $0x10] sm:$0xff]
    %v81 = vld [vmem:[#allocation6 + $0x18] sm:$0xff]
    %v82 = vld [vmem:[#allocation6 + $0x20] sm:$0xff]
    %v83 = vld [vmem:[#allocation6 + $0x28] sm:$0xff]
    %v84 = vld [vmem:[#allocation6 + $0x30] sm:$0xff]
    %v85 = vld [vmem:[#allocation6 + $0x38] sm:$0xff]
    %v86 = vld [vmem:[#allocation6 + $0x40] sm:$0xff]
    %v87 = vld [vmem:[#allocation6 + $0x48] sm:$0xff]
    %v88 = vld [vmem:[#allocation6 + $0x50] sm:$0xff]
    %v89 = vld [vmem:[#allocation6 + $0x58] sm:$0xff]
    %v90 = vld [vmem:[#allocation6 + $0x60] sm:$0xff]
    %v91 = vld [vmem:[#allocation6 + $0x68] sm:$0xff]
    %v92 = vld [vmem:[#allocation6 + $0x70] sm:$0xff]
    %v93 = vld [vmem:[#allocation6 + $0x78] sm:$0xff]
    %94 = vmatprep.subr.mxu0 0.0
    %95 = vmatpush1.msra.mxu0 %v78
    %96 = vmatprep.subr.mxu0 0.0
    %97 = vmatpush1.msra.mxu0 %v79
    %98 = vmatprep.subr.mxu0 0.0
    %99 = vmatpush1.msra.mxu0 %v80
    %100 = vmatprep.subr.mxu0 0.0
    %101 = vmatpush1.msra.mxu0 %v81
    %102 = vmatprep.subr.mxu0 0.0
    %103 = vmatpush1.msra.mxu0 %v82
    %104 = vmatprep.subr.mxu0 0.0
    %105 = vmatpush1.msra.mxu0 %v83
    %106 = vmatprep.subr.mxu0 0.0
    %107 = vmatpush1.msra.mxu0 %v84
    %108 = vmatprep.subr.mxu0 0.0
    %109 = vmatpush1.msra.mxu0 %v85
    %110 = vmatprep.subr.mxu0 0.0
    %111 = vmatpush1.msra.mxu0 %v86
    %112 = vmatprep.subr.mxu0 0.0
    %113 = vmatpush1.msra.mxu0 %v87
    %114 = vmatprep.subr.mxu0 0.0
    %115 = vmatpush1.msra.mxu0 %v88
    %116 = vmatprep.subr.mxu0 0.0
    %117 = vmatpush1.msra.mxu0 %v89
    %118 = vmatprep.subr.mxu0 0.0
    %119 = vmatpush1.msra.mxu0 %v90
    %120 = vmatprep.subr.mxu0 0.0
    %121 = vmatpush1.msra.mxu0 %v91
    %122 = vmatprep.subr.mxu0 0.0
    %123 = vmatpush1.msra.mxu0 %v92
    %124 = vmatprep.subr.mxu0 0.0
    %125 = vmatpush1.msra.mxu0 %v93
    %126 = vmatprep.subr.mxu0 0.0
    %127 = vmatpush1.msra.mxu0 0.0
    %128 = vmatprep.subr.mxu0 0.0
    %129 = vmatpush1.msra.mxu0 0.0
    %130 = vmatprep.subr.mxu0 0.0
    %131 = vmatpush1.msra.mxu0 0.0
    %132 = vmatprep.subr.mxu0 0.0
    %133 = vmatpush1.msra.mxu0 0.0
    %134 = vmatprep.subr.mxu0 0.0
    %135 = vmatpush1.msra.mxu0 0.0
    %136 = vmatprep.subr.mxu0 0.0
    %137 = vmatpush1.msra.mxu0 0.0
    %138 = vmatprep.subr.mxu0 0.0
    %139 = vmatpush1.msra.mxu0 0.0
    %140 = vmatprep.subr.mxu0 0.0
    %141 = vmatpush1.msra.mxu0 0.0
    %142 = vmatprep.subr.mxu0 0.0
    %143 = vmatpush1.msra.mxu0 0.0
    %144 = vmatprep.subr.mxu0 0.0
    %145 = vmatpush1.msra.mxu0 0.0
    %146 = vmatprep.subr.mxu0 0.0
    %147 = vmatpush1.msra.mxu0 0.0
    %148 = vmatprep.subr.mxu0 0.0
    %149 = vmatpush1.msra.mxu0 0.0
    %150 = vmatprep.subr.mxu0 0.0
    %151 = vmatpush1.msra.mxu0 0.0
    %152 = vmatprep.subr.mxu0 0.0
    %153 = vmatpush1.msra.mxu0 0.0
    %154 = vmatprep.subr.mxu0 0.0
    %155 = vmatpush1.msra.mxu0 0.0
    %156 = vmatprep.subr.mxu0 0.0
    %157 = vmatpush1.msra.mxu0 0.0
    %158 = vmatprep.mubr.f32.mxu0 0.0
    %159 = vmatmul.mubr.f32.gmra.mrb[0].mxu0 %v76
    %v160 = vpop.f32.mrb[0].mxu0
    %v161 = vadd.f32 0.0, %v160
    %v162 = vpop.f32.mrb[0].mxu0
    %163 = vmatprep.mubr.f32.mxu0 0.0
    %164 = vmatmul.mubr.f32.gmra.mrb[0].mxu0 %v77
    %v165 = vpop.f32.mrb[0].mxu0
    %v166 = vadd.f32 0.0, %v165
    %v167 = vpop.f32.mrb[0].mxu0
    %168 = vdwg.mxu0
    %p169 = scmp.eq.s32.totalorder 0, 0
    // Predicated region
    $region38: #{tpu_custom_call.1} parent=1 // pred_check
      %p170 = pneg %p169
    $region39: #{tpu_custom_call.1} parent=1 // pred_check_branch
      %172 = sbr.rel (%p170) target = $region41
    $region40: #{tpu_custom_call.1} parent=1 // pred_region
      %173 = vst [vmem:[#allocation2] sm:$0xff] %v161
      %174 = vst [vmem:[#allocation2 + $0x8] sm:$0xff] %v166
    $region41: #{tpu_custom_call.1} parent=1 // pred_fallthru
      _
    %p175 = scmp.ne.s32.totalorder 0, 0
    // Predicated region
    $region42: #{tpu_custom_call.1} parent=1 // pred_check
      %p176 = pneg %p175
    $region43: #{tpu_custom_call.1} parent=1 // pred_check_branch
      %178 = sbr.rel (%p176) target = $region45
    $region44: #{tpu_custom_call.1} parent=1 // pred_region
      %v179 = vld [vmem:[#allocation2] sm:$0xff]
      %v180 = vld [vmem:[#allocation2 + $0x8] sm:$0xff]
      %v181 = vadd.f32 %v179, %v161
      %v182 = vadd.f32 %v180, %v166
      %183 = vst [vmem:[#allocation2] sm:$0xff] %v181
      %184 = vst [vmem:[#allocation2 + $0x8] sm:$0xff] %v182
    $region45: #{tpu_custom_call.1} parent=1 // pred_fallthru
      _
    // Predicated region
    $region46: #{tpu_custom_call.1} parent=1 // pred_check
      %p185 = pneg %p169
    $region47: #{tpu_custom_call.1} parent=1 // pred_check_branch
      %187 = sbr.rel (%p185) target = $region49
    $region48: #{tpu_custom_call.1} parent=1 // pred_region
      %v188 = vld [vmem:[#allocation8] sm:$0xff]
      %v189 = vld [vmem:[#allocation8 + $0x8] sm:$0xff]
      %v190 = vld [vmem:[#allocation9] sm:$0xff]
      %v191 = vld [vmem:[#allocation9 + $0x8] sm:$0xff]
      %v192 = vld [vmem:[#allocation9 + $0x10] sm:$0xff]
      %v193 = vld [vmem:[#allocation9 + $0x18] sm:$0xff]
      %v194 = vld [vmem:[#allocation9 + $0x20] sm:$0xff]
      %v195 = vld [vmem:[#allocation9 + $0x28] sm:$0xff]
      %v196 = vld [vmem:[#allocation9 + $0x30] sm:$0xff]
      %v197 = vld [vmem:[#allocation9 + $0x38] sm:$0xff]
      %v198 = vld [vmem:[#allocation9 + $0x40] sm:$0xff]
      %v199 = vld [vmem:[#allocation9 + $0x48] sm:$0xff]
      %v200 = vld [vmem:[#allocation9 + $0x50] sm:$0xff]
      %v201 = vld [vmem:[#allocation9 + $0x58] sm:$0xff]
      %v202 = vld [vmem:[#allocation9 + $0x60] sm:$0xff]
      %v203 = vld [vmem:[#allocation9 + $0x68] sm:$0xff]
      %v204 = vld [vmem:[#allocation9 + $0x70] sm:$0xff]
      %v205 = vld [vmem:[#allocation9 + $0x78] sm:$0xff]
      %206 = vmatprep.subr.mxu0 0.0
      %207 = vmatpush1.msra.mxu0 %v190
      %208 = vmatprep.subr.mxu0 0.0
      %209 = vmatpush1.msra.mxu0 %v191
      %210 = vmatprep.subr.mxu0 0.0
      %211 = vmatpush1.msra.mxu0 %v192
      %212 = vmatprep.subr.mxu0 0.0
      %213 = vmatpush1.msra.mxu0 %v193
      %214 = vmatprep.subr.mxu0 0.0
      %215 = vmatpush1.msra.mxu0 %v194
      %216 = vmatprep.subr.mxu0 0.0
      %217 = vmatpush1.msra.mxu0 %v195
      %218 = vmatprep.subr.mxu0 0.0
      %219 = vmatpush1.msra.mxu0 %v196
      %220 = vmatprep.subr.mxu0 0.0
      %221 = vmatpush1.msra.mxu0 %v197
      %222 = vmatprep.subr.mxu0 0.0
      %223 = vmatpush1.msra.mxu0 %v198
      %224 = vmatprep.subr.mxu0 0.0
      %225 = vmatpush1.msra.mxu0 %v199
      %226 = vmatprep.subr.mxu0 0.0
      %227 = vmatpush1.msra.mxu0 %v200
      %228 = vmatprep.subr.mxu0 0.0
      %229 = vmatpush1.msra.mxu0 %v201
      %230 = vmatprep.subr.mxu0 0.0
      %231 = vmatpush1.msra.mxu0 %v202
      %232 = vmatprep.subr.mxu0 0.0
      %233 = vmatpush1.msra.mxu0 %v203
      %234 = vmatprep.subr.mxu0 0.0
      %235 = vmatpush1.msra.mxu0 %v204
      %236 = vmatprep.subr.mxu0 0.0
      %237 = vmatpush1.msra.mxu0 %v205
      %238 = vmatprep.subr.mxu0 0.0
      %239 = vmatpush1.msra.mxu0 0.0
      %240 = vmatprep.subr.mxu0 0.0
      %241 = vmatpush1.msra.mxu0 0.0
      %242 = vmatprep.subr.mxu0 0.0
      %243 = vmatpush1.msra.mxu0 0.0
      %244 = vmatprep.subr.mxu0 0.0
      %245 = vmatpush1.msra.mxu0 0.0
      %246 = vmatprep.subr.mxu0 0.0
      %247 = vmatpush1.msra.mxu0 0.0
      %248 = vmatprep.subr.mxu0 0.0
      %249 = vmatpush1.msra.mxu0 0.0
      %250 = vmatprep.subr.mxu0 0.0
      %251 = vmatpush1.msra.mxu0 0.0
      %252 = vmatprep.subr.mxu0 0.0
      %253 = vmatpush1.msra.mxu0 0.0
      %254 = vmatprep.subr.mxu0 0.0
      %255 = vmatpush1.msra.mxu0 0.0
      %256 = vmatprep.subr.mxu0 0.0
      %257 = vmatpush1.msra.mxu0 0.0
      %258 = vmatprep.subr.mxu0 0.0
      %259 = vmatpush1.msra.mxu0 0.0
      %260 = vmatprep.subr.mxu0 0.0
      %261 = vmatpush1.msra.mxu0 0.0
      %262 = vmatprep.subr.mxu0 0.0
      %263 = vmatpush1.msra.mxu0 0.0
      %264 = vmatprep.subr.mxu0 0.0
      %265 = vmatpush1.msra.mxu0 0.0
      %266 = vmatprep.subr.mxu0 0.0
      %267 = vmatpush1.msra.mxu0 0.0
      %268 = vmatprep.subr.mxu0 0.0
      %269 = vmatpush1.msra.mxu0 0.0
      %270 = vmatprep.mubr.f32.mxu0 0.0
      %271 = vmatmul.mubr.f32.gmra.mrb[0].mxu0 %v188
      %v272 = vpop.f32.mrb[0].mxu0
      %v273 = vadd.f32 0.0, %v272
      %v274 = vpop.f32.mrb[0].mxu0
      %275 = vmatprep.mubr.f32.mxu0 0.0
      %276 = vmatmul.mubr.f32.gmra.mrb[0].mxu0 %v189
      %v277 = vpop.f32.mrb[0].mxu0
      %v278 = vadd.f32 0.0, %v277
      %v279 = vpop.f32.mrb[0].mxu0
      %280 = vdwg.mxu0
      %v281 = vld [vmem:[#allocation2] sm:$0xff]
      %v282 = vld [vmem:[#allocation2 + $0x8] sm:$0xff]
      %v283 = vld [vmem:[%s2] sm:$0x1]
      %v285 = vlaneseq
      %v286 = vshrl.u32 %v285, 7
      %v287 = vsub.s32 0, %v286
      %v288 = vrot.slane %v283, %v287
      %v290 = vadd.f32 %v281, %v288
      %v291 = vadd.f32 %v282, %v288
      %v292 = vadd.f32 %v290, %v273
      %v293 = vadd.f32 %v291, %v278
      %294 = vst [vmem:[#allocation11] sm:$0xff] %v292
      %295 = vst [vmem:[#allocation11 + $0x8] sm:$0xff] %v293
    $region49: #{tpu_custom_call.1} parent=1 // pred_fallthru
      _
    // Predicated region
    $region50: #{tpu_custom_call.1} parent=1 // pred_check
      _
    $region51: #{tpu_custom_call.1} parent=1 // pred_check_branch
      %297 = sbr.rel (0) target = $region53
    $region52: #{tpu_custom_call.1} parent=1 // pred_region
      %s299 = ssub.s32 256, 256
      %300 = vsyncadd [#allocation5], %s299
      %s301 = sshll.u32 [#allocation11], 4
      %s302 = int_to_ptr.vmem [resolvable:$true] %s301
      %307 = dma.vmem_to_hbm [thread:$0]  %s302, 256, %s5, [#allocation5], 128, 128, 8
    $region53: #{tpu_custom_call.1} parent=1 // pred_fallthru
      _
    // Predicated region
    $region54: #{tpu_custom_call.1} parent=1 // pred_check
      _
    $region55: #{tpu_custom_call.1} parent=1 // pred_check_branch
      %309 = sbr.rel (0) target = $region57
    $region56: #{tpu_custom_call.1} parent=1 // pred_region
      %310 = dma.done [#allocation5], 256
    $region57: #{tpu_custom_call.1} parent=1 // pred_fallthru
      _
    %311 = vsyncpa [#allocation4], 1
    %312 = vsyncpa [#allocation7], 1
    %313 = vsyncpa [#allocation10], 1
    %314 = vsyncpa [#allocation5], 1

</llo_original>
